<compile_context>
chip_gen: v6e
topology: v6e:2x2x1
jax: 0.10.0
libtpu: 0.0.40
codegen_flags: <defaults>
</compile_context>

<pallas_src>
import jax
import jax.numpy as jnp
from jax.experimental import pallas as pl
from jax.experimental.pallas import tpu as pltpu

EPS = 1e-5
CLAMP_VALUE = 5.0

# Tile-size targets: 512 x 2048 f32 = 4 MiB per in/out tile. Double-buffered
# in + out (~16 MiB) fits v7x (64 MiB physical VMEM) with headroom and is past
# the knee of the per-step-overhead curve on v5e/v6e/v7x.
_TB_TARGET = 512
_TD_TARGET = 2048

# Below this many input bytes, skip pallas_call entirely (custom-call +
# pipeline prologue dominate; XLA also fuses the normalize into neighbors).
_SMALL_INPUT_BYTES = 1 << 20


def _round_up(x, m):
    return (x + m - 1) // m * m


def _sublane_multiple(dtype):
    # 8 rows for 4-byte dtypes, 16 for bf16/fp16, 32 for int8/fp8.
    itemsize = jnp.dtype(dtype).itemsize
    return max(8, 32 // itemsize)


def _pick_tile(dim, target, align):
    t = min(target, _round_up(dim, align))
    if t > dim:
        t = dim  # full-dim block: always legal, avoids block > array-dim cases
    return t


def _flatten_norm_kernel(x_ref, mean_ref, inv_std_ref, o_ref):
    # x_ref:       (TB, TD)  flattened observation tile
    # mean_ref:    (1,  TD)  running mean tile     (broadcast over batch rows)
    # inv_std_ref: (1,  TD)  1/sqrt(var + eps)     (broadcast over batch rows)
    x = x_ref[...].astype(jnp.float32)
    y = (x - mean_ref[...]) * inv_std_ref[...]
    o_ref[...] = jnp.clip(y, -CLAMP_VALUE, CLAMP_VALUE).astype(o_ref.dtype)


def flatten_forward(obs, running_mean, running_var, normalize_obs=True,
                    min_pallas_bytes=_SMALL_INPUT_BYTES):
    """Equivalent of Flatten.forward({'obs': obs}) in eval / inference mode.

    obs: (B, C, H, W) NCHW tensor (or any (B, ...) tensor).
    Returns (B, D) flattened (and optionally normalized) observations.
    Floating-point obs keep their dtype; integer obs produce float32 output
    (matching the torch reference, where normalization promotes to float).
    """
    B = obs.shape[0]
    D = int(obs.size // B)
    x = obs.reshape(B, D)  # nn.Flatten(): pure reshape, done in JAX glue

    if not normalize_obs:
        return x

    out_dtype = x.dtype if jnp.issubdtype(x.dtype, jnp.floating) else jnp.float32

    # Precompute inv_std once (size D) instead of per batch-tile in the kernel.
    mean2d = running_mean.astype(jnp.float32).reshape(1, D)
    inv_std2d = jax.lax.rsqrt(running_var.astype(jnp.float32) + EPS).reshape(1, D)

    # Small-input fast path: plain XLA (fusable, no custom-call overhead).
    if x.size * jnp.dtype(x.dtype).itemsize < min_pallas_bytes:
        y = (x.astype(jnp.float32) - mean2d) * inv_std2d
        return jnp.clip(y, -CLAMP_VALUE, CLAMP_VALUE).astype(out_dtype)

    # ---- tile selection: lane-dense, sublane-aligned, no padding of x ----
    sub = max(_sublane_multiple(x.dtype), _sublane_multiple(out_dtype))
    TB = _pick_tile(B, _TB_TARGET, sub)
    TD = _pick_tile(D, _TD_TARGET, 128)

    # v7x has 2 TensorCores: make sure there are >= 2 grid steps when possible
    # so dimension_semantics=("parallel","parallel") can shard them.
    if pl.cdiv(B, TB) * pl.cdiv(D, TD) == 1:
        if B >= 2 * sub:
            TB = _round_up(pl.cdiv(B, 2), sub)
        elif D >= 2 * 128:
            TD = _round_up(pl.cdiv(D, 2), 128)

    num_b = pl.cdiv(B, TB)
    num_d = pl.cdiv(D, TD)

    # Only the tiny (1, D) stats are padded (to the feature-tile multiple) so
    # their blocks never read unspecified data; x / output boundary blocks are
    # handled by Pallas (OOB reads don't matter elementwise, OOB writes masked).
    D_stats = num_d * TD
    mean_p, inv_std_p = mean2d, inv_std2d
    if D_stats != D:
        mean_p = jnp.pad(mean2d, ((0, 0), (0, D_stats - D)))
        inv_std_p = jnp.pad(inv_std2d, ((0, 0), (0, D_stats - D)),
                            constant_values=1.0)

    # Grid: feature tiles outer, batch tiles inner -> mean/inv_std block index
    # is constant across consecutive steps, so Pallas skips re-fetching them.
    out = pl.pallas_call(
        _flatten_norm_kernel,
        out_shape=jax.ShapeDtypeStruct((B, D), out_dtype),
        grid_spec=pl.GridSpec(
            grid=(num_d, num_b),
            in_specs=[
                pl.BlockSpec((TB, TD), lambda d, b: (b, d)),
                pl.BlockSpec((1, TD), lambda d, b: (0, d)),
                pl.BlockSpec((1, TD), lambda d, b: (0, d)),
            ],
            out_specs=pl.BlockSpec((TB, TD), lambda d, b: (b, d)),
        ),
        compiler_params=pltpu.CompilerParams(
            dimension_semantics=("parallel", "parallel"),
            vmem_limit_bytes=48 * 1024 * 1024,
        ),
    )(x, mean_p, inv_std_p)
    return out


def _reference(obs, mean, var):
    x = obs.reshape(obs.shape[0], -1).astype(jnp.float32)
    y = (x - mean[None, :]) / jnp.sqrt(var[None, :] + EPS)
    return jnp.clip(y, -CLAMP_VALUE, CLAMP_VALUE)


if __name__ == "__main__":
    key = jax.random.PRNGKey(0)
    k_obs, k_mean, k_var = jax.random.split(key, 3)

    # --- Test A/B: small NCHW observation batch (conv-style obs space) ------
    B, C, H, W = 2, 4, 16, 16
    obs = jax.random.normal(k_obs, (B, C, H, W), dtype=jnp.float32)
    D = C * H * W
    running_mean = 0.1 * jax.random.normal(k_mean, (D,), dtype=jnp.float32)
    running_var = jnp.abs(jax.random.normal(k_var, (D,), dtype=jnp.float32)) + 0.5
    ref = _reference(obs, running_mean, running_var)

    # A) default path (small input -> plain-jnp fast path)
    out_fast = jax.block_until_ready(
        flatten_forward(obs, running_mean, running_var))
    assert out_fast.shape == (B, D) and out_fast.dtype == obs.dtype
    assert jnp.allclose(out_fast, ref, atol=1e-5, rtol=1e-5)

    # B) same shape forced through the Pallas kernel
    out_pallas = jax.block_until_ready(
        flatten_forward(obs, running_mean, running_var, min_pallas_bytes=0))
    assert out_pallas.shape == (B, D) and out_pallas.dtype == obs.dtype
    assert jnp.allclose(out_pallas, ref, atol=1e-5, rtol=1e-5)

    # --- Test C: unaligned feature dim -> partial boundary blocks + stat pad -
    B2, C2, H2, W2 = 4, 5, 21, 21          # D2 = 2205 (not a multiple of 2048/128)
    D2 = C2 * H2 * W2
    obs2 = jax.random.normal(k_obs, (B2, C2, H2, W2), dtype=jnp.float32)
    rm2 = 0.1 * jax.random.normal(k_mean, (D2,), dtype=jnp.float32)
    rv2 = jnp.abs(jax.random.normal(k_var, (D2,), dtype=jnp.float32)) + 0.5
    out2 = jax.block_until_ready(
        flatten_forward(obs2, rm2, rv2, min_pallas_bytes=0))
    assert out2.shape == (B2, D2) and out2.dtype == obs2.dtype
    assert jnp.allclose(out2, _reference(obs2, rm2, rv2), atol=1e-5, rtol=1e-5)

    # --- Test D: integer (uint8 image-style) obs -> float32 output ----------
    B3, C3, H3, W3 = 8, 4, 16, 16
    D3 = C3 * H3 * W3
    obs3 = jax.random.randint(k_obs, (B3, C3, H3, W3), 0, 256, dtype=jnp.int32)
    obs3 = obs3.astype(jnp.uint8)
    rm3 = 128.0 + jax.random.normal(k_mean, (D3,), dtype=jnp.float32)
    rv3 = jnp.abs(jax.random.normal(k_var, (D3,), dtype=jnp.float32)) * 100.0 + 1.0
    out3 = jax.block_until_ready(
        flatten_forward(obs3, rm3, rv3, min_pallas_bytes=0))
    assert out3.shape == (B3, D3) and out3.dtype == jnp.float32
    assert jnp.allclose(out3, _reference(obs3, rm3, rv3), atol=1e-5, rtol=1e-5)

    print("KERNEL_OK")
</pallas_src>

<mosaic_0001>
module attributes {stable_mosaic.version = 11 : i64} {
  func.func @_flatten_norm_kernel(%arg0: i32, %arg1: i32, %arg2: memref<2x512xf32, #tpu.memory_space<vmem>>, %arg3: memref<1x512xf32, #tpu.memory_space<vmem>>, %arg4: memref<1x512xf32, #tpu.memory_space<vmem>>, %arg5: memref<2x512xf32, #tpu.memory_space<vmem>>) attributes {dimension_semantics = [#tpu.dimension_semantics<parallel>, #tpu.dimension_semantics<parallel>], iteration_bounds = array<i64: 2, 1>, scalar_prefetch = 0 : i64, scratch_operands = 0 : i64, tpu.core_type = #tpu.core_type<tc>, window_params = [{transform_indices = @transform_0, window_bounds = array<i64: 2, 512>}, {transform_indices = @transform_1, window_bounds = array<i64: 1, 512>}, {transform_indices = @transform_2, window_bounds = array<i64: 1, 512>}, {transform_indices = @transform_3, window_bounds = array<i64: 2, 512>}]} {
    %c0 = arith.constant 0 : index
    %c0_0 = arith.constant 0 : index
    %0 = vector.load %arg2[%c0, %c0_0] : memref<2x512xf32, #tpu.memory_space<vmem>>, vector<2x512xf32>
    %c0_1 = arith.constant 0 : index
    %c0_2 = arith.constant 0 : index
    %1 = vector.load %arg3[%c0_1, %c0_2] : memref<1x512xf32, #tpu.memory_space<vmem>>, vector<1x512xf32>
    %2 = vector.broadcast %1 : vector<1x512xf32> to vector<2x512xf32>
    %3 = arith.subf %0, %2 : vector<2x512xf32>
    %c0_3 = arith.constant 0 : index
    %c0_4 = arith.constant 0 : index
    %4 = vector.load %arg4[%c0_3, %c0_4] : memref<1x512xf32, #tpu.memory_space<vmem>>, vector<1x512xf32>
    %5 = vector.broadcast %4 : vector<1x512xf32> to vector<2x512xf32>
    %6 = arith.mulf %3, %5 : vector<2x512xf32>
    %cst = arith.constant -5.000000e+00 : f32
    %cst_5 = arith.constant 5.000000e+00 : f32
    %7 = vector.broadcast %cst : f32 to vector<2x512xf32>
    %8 = arith.maximumf %7, %6 : vector<2x512xf32>
    %9 = vector.broadcast %cst_5 : f32 to vector<2x512xf32>
    %10 = arith.minimumf %9, %8 : vector<2x512xf32>
    %c0_6 = arith.constant 0 : index
    %c0_7 = arith.constant 0 : index
    %11 = vector.load %arg5[%c0_6, %c0_7] : memref<2x512xf32, #tpu.memory_space<vmem>>, vector<2x512xf32>
    tpu.vector_store %arg5[%c0_6, %c0_7], %10 {strides = array<i32>} : memref<2x512xf32, #tpu.memory_space<vmem>>, vector<2x512xf32>,
    return
  }
  func.func @transform_0(%arg0: i32, %arg1: i32) -> (i32, i32) {
    %c0_i32 = arith.constant 0 : i32
    return %arg1, %arg0 : i32, i32
  }
  func.func @transform_1(%arg0: i32, %arg1: i32) -> (i32, i32) {
    %c0_i32 = arith.constant 0 : i32
    %c0_i32_0 = arith.constant 0 : i32
    return %c0_i32, %arg0 : i32, i32
  }
  func.func @transform_2(%arg0: i32, %arg1: i32) -> (i32, i32) {
    %c0_i32 = arith.constant 0 : i32
    %c0_i32_0 = arith.constant 0 : i32
    return %c0_i32, %arg0 : i32, i32
  }
  func.func @transform_3(%arg0: i32, %arg1: i32) -> (i32, i32) {
    %c0_i32 = arith.constant 0 : i32
    return %arg1, %arg0 : i32, i32
  }
}

</mosaic_0001>

<llo_original>
// kernel: tpu_custom_call.1
$region0: #{tpu_custom_call.1}
  #allocation0 [shape = 'u32[]', space=smem, size = 0x4, offset = 0x4, fixed_abs, tag = 'smem constant byte address 0x4 - core index']
  #allocation1 [shape = 'u32[144,128]{1,0:T(1,128)}', space=vmem, size = 0x12000, scoped, tag = 'internal scratch']
  %s0 = inlined_call_operand.hbm [shape: f32[2,1024], index: 0, kind: input, shape index: {}]
  %s1 = inlined_call_operand.hbm [shape: f32[1,1024], index: 1, kind: input, shape index: {}]
  %s2 = inlined_call_operand.hbm [shape: f32[1,1024], index: 2, kind: input, shape index: {}]
  %s3 = inlined_call_operand.hbm [shape: f32[2,1024], index: 3, kind: output, shape index: {}]
  %s4 = sld [smem:[#allocation0]]
  $region57: #{tpu_custom_call.1} parent=0
    _
  %s6 = ssub.s32 1, %s4
  %s7 = scalar_select 0, %s6, %s4
  $region1: #{tpu_custom_call.1} parent=0
    #allocation2 [shape = 'u8[8192]{0}', space=vmem, size = 0x2000, scoped, tag = 'input window, operand 0']
    #allocation3 [shape = 's32[2]{0}', space=sflag, size = 0x8, scoped, tag = 'scoped memory for tpu_custom_call.1']
    #allocation4 [shape = 's32[2]{0}', space=sflag, size = 0x8, scoped, tag = 'scoped memory for tpu_custom_call.1']
    #allocation5 [shape = 'u8[4096]{0}', space=vmem, size = 0x1000, scoped, tag = 'input window, operand 1']
    #allocation6 [shape = 's32[2]{0}', space=sflag, size = 0x8, scoped, tag = 'scoped memory for tpu_custom_call.1']
    #allocation7 [shape = 'u8[4096]{0}', space=vmem, size = 0x1000, scoped, tag = 'input window, operand 2']
    #allocation8 [shape = 'u8[8192]{0}', space=vmem, size = 0x2000, scoped, tag = 'output window, operand 0']
    %8 = vsyncpa [#allocation3], 0
    %s9 = scalar_lea.sflag [#allocation3], 1
    %10 = vsyncpa %s9, 0
    %11 = vsyncpa [#allocation6], 0
    %s12 = scalar_lea.sflag [#allocation6], 1
    %13 = vsyncpa %s12, 0
    %14 = vsyncpa [#allocation4], 0
    %s15 = scalar_lea.sflag [#allocation4], 1
    %16 = vsyncpa %s15, 0
    loop: start=0, step=1, limit=4
    $region2: #{tpu_custom_call.1} parent=1 // loop_pre_header
      _
    $region3: #{tpu_custom_call.1} parent=1 // loop_header
      %s18 = sphi 0, %s22
      %p19 = scmp.ge.s32.totalorder %s18, 4
      %s25 = sphi 0, %s37
      %s26 = sphi 0, %s33
      %s27 = sphi 0, %s25
      %s28 = sphi 0, %s26
      %s29 = sphi 0, %s27
      %s30 = sphi 0, %s28
      %s42 = sphi 0, %s44
      %s45 = sphi 0, %s42
      %s46 = sphi 0, %s45
      %s62 = sphi 0, %s46
      %s68 = sphi 0, %s70
      %s71 = sphi 0, %s68
      %s72 = sphi 0, %s71
      %s88 = sphi 0, %s72
      %s94 = sphi 0, %s96
      %s97 = sphi 0, %s94
      %s98 = sphi 0, %s97
      %s114 = sphi 0, %s98
      %s122 = sphi 0, %s124
      %s125 = sphi 0, %s122
      %s126 = sphi 0, %s125
      %s142 = sphi 0, %s126
    $region4: #{tpu_custom_call.1} parent=1 // loop_header_branch
      %21 = sbr.rel (%p19) target = $region8
    $region5: #{tpu_custom_call.1} parent=1 // loop_body
      %s23 = ssub.s32 %s18, 1
      %s24 = ssub.s32 %s18, 2
      %s31 = sadd.s32 1, %s26
      %p32 = scmp.ge.s32.totalorder %s31, 1
      %s33 = scalar_select %p32, 0, %s31
      %s34 = sadd.s32 1, %s25
      %s35 = scalar_select %p32, %s34, %s25
      %p36 = scmp.ge.s32.totalorder %s35, 2
      %s37 = scalar_select %p36, 0, %s35
      %s38 = ssub.s32 %s26, %s33
      %s39 = ssub.s32 %s25, %s37
      %s40 = sor.u32 %s38, %s39
      %p41 = scmp.eq.s32.totalorder %s40, 0
      %s43 = sadd.s32 %s42, 1
      %s44 = scalar_select %p41, %s42, %s43
      %p47 = pneg %p41
      %p48 = scmp.eq.s32.totalorder %s18, 1
      %p49 = por %p47, %p48
      %p50 = scmp.ne.s32.totalorder %s42, %s45
      %p51 = scmp.eq.s32.totalorder %s18, 0
      %p52 = por %p50, %p51
      %p53 = scmp.ne.s32.totalorder %s42, %s45
      %p54 = scmp.eq.s32.totalorder %s23, 1
      %p55 = por %p53, %p54
      %p56 = scmp.ne.s32.totalorder %s45, %s46
      %p57 = scmp.eq.s32.totalorder %s23, 0
      %p58 = por %p56, %p57
      %p59 = scmp.ne.s32.totalorder %s45, %s46
      %p60 = scmp.eq.s32.totalorder %s24, 1
      %p61 = por %p59, %p60
      %p63 = scmp.ne.s32.totalorder %s46, %s62
      %p64 = scmp.eq.s32.totalorder %s24, 0
      %p65 = por %p63, %p64
      %s66 = ssub.s32 %s25, %s37
      %p67 = scmp.eq.s32.totalorder %s66, 0
      %s69 = sadd.s32 %s68, 1
      %s70 = scalar_select %p67, %s68, %s69
      %p73 = pneg %p67
      %p74 = scmp.eq.s32.totalorder %s18, 1
      %p75 = por %p73, %p74
      %p76 = scmp.ne.s32.totalorder %s68, %s71
      %p77 = scmp.eq.s32.totalorder %s18, 0
      %p78 = por %p76, %p77
      %p79 = scmp.ne.s32.totalorder %s68, %s71
      %p80 = scmp.eq.s32.totalorder %s23, 1
      %p81 = por %p79, %p80
      %p82 = scmp.ne.s32.totalorder %s71, %s72
      %p83 = scmp.eq.s32.totalorder %s23, 0
      %p84 = por %p82, %p83
      %p85 = scmp.ne.s32.totalorder %s71, %s72
      %p86 = scmp.eq.s32.totalorder %s24, 1
      %p87 = por %p85, %p86
      %p89 = scmp.ne.s32.totalorder %s72, %s88
      %p90 = scmp.eq.s32.totalorder %s24, 0
      %p91 = por %p89, %p90
      %s92 = ssub.s32 %s25, %s37
      %p93 = scmp.eq.s32.totalorder %s92, 0
      %s95 = sadd.s32 %s94, 1
      %s96 = scalar_select %p93, %s94, %s95
      %p99 = pneg %p93
      %p100 = scmp.eq.s32.totalorder %s18, 1
      %p101 = por %p99, %p100
      %p102 = scmp.ne.s32.totalorder %s94, %s97
      %p103 = scmp.eq.s32.totalorder %s18, 0
      %p104 = por %p102, %p103
      %p105 = scmp.ne.s32.totalorder %s94, %s97
      %p106 = scmp.eq.s32.totalorder %s23, 1
      %p107 = por %p105, %p106
      %p108 = scmp.ne.s32.totalorder %s97, %s98
      %p109 = scmp.eq.s32.totalorder %s23, 0
      %p110 = por %p108, %p109
      %p111 = scmp.ne.s32.totalorder %s97, %s98
      %p112 = scmp.eq.s32.totalorder %s24, 1
      %p113 = por %p111, %p112
      %p115 = scmp.ne.s32.totalorder %s98, %s114
      %p116 = scmp.eq.s32.totalorder %s24, 0
      %p117 = por %p115, %p116
      %s118 = ssub.s32 %s26, %s33
      %s119 = ssub.s32 %s25, %s37
      %s120 = sor.u32 %s118, %s119
      %p121 = scmp.eq.s32.totalorder %s120, 0
      %s123 = sadd.s32 %s122, 1
      %s124 = scalar_select %p121, %s122, %s123
      %p127 = pneg %p121
      %p128 = scmp.eq.s32.totalorder %s18, 1
      %p129 = por %p127, %p128
      %p130 = scmp.ne.s32.totalorder %s122, %s125
      %p131 = scmp.eq.s32.totalorder %s18, 0
      %p132 = por %p130, %p131
      %p133 = scmp.ne.s32.totalorder %s122, %s125
      %p134 = scmp.eq.s32.totalorder %s23, 1
      %p135 = por %p133, %p134
      %p136 = scmp.ne.s32.totalorder %s125, %s126
      %p137 = scmp.eq.s32.totalorder %s23, 0
      %p138 = por %p136, %p137
      %p139 = scmp.ne.s32.totalorder %s125, %s126
      %p140 = scmp.eq.s32.totalorder %s24, 1
      %p141 = por %p139, %p140
      %p143 = scmp.ne.s32.totalorder %s126, %s142
      %p144 = scmp.eq.s32.totalorder %s24, 0
      %p145 = por %p143, %p144
      %p146 = scmp.le.s32.totalorder 1, %s18
      %p147 = scmp.lt.s32.totalorder %s18, 3
      %p148 = pnand %p146, %p147
      %p149 = pneg %p148
      // Predicated region
      $region9: #{tpu_custom_call.1} parent=5 // pred_check
        _
      $region10: #{tpu_custom_call.1} parent=5 // pred_check_branch
        %151 = sbr.rel (%p148) target = $region12
      $region11: #{tpu_custom_call.1} parent=5 // pred_region
        %s152 = ssub.s32 %s18, 1
      $region12: #{tpu_custom_call.1} parent=5 // pred_fallthru
        _
      %p153 = scmp.lt.s32.totalorder %s18, 2
      // Predicated region
      $region13: #{tpu_custom_call.1} parent=5 // pred_check
        %p154 = pneg %p153
      $region14: #{tpu_custom_call.1} parent=5 // pred_check_branch
        %156 = sbr.rel (%p154) target = $region16
      $region15: #{tpu_custom_call.1} parent=5 // pred_region
        // Predicated region
        $region17: #{tpu_custom_call.1} parent=15 // pred_check
          %p157 = pneg %p52
        $region18: #{tpu_custom_call.1} parent=15 // pred_check_branch
          %159 = sbr.rel (%p157) target = $region20
        $region19: #{tpu_custom_call.1} parent=15 // pred_region
          %s160 = sand.u32 %s42, 1
          %s161 = scalar_lea.sflag [#allocation3], %s160
          %s162 = sand.u32 %s42, 1
          %s163 = smul.addr %s162, 8
          %s164 = scalar_lea.vmem [#allocation2], %s163
          %s165 = smul.u32 4, %s25
          %s167 = ssub.s32 128, 128
          %168 = vsyncadd %s161, %s167
          %s169 = smul.addr %s26, 8
          %s170 = sadd.s32 %s165, %s169
          %s171 = smul.addr %s170, 32
          %s172 = scalar_lea.hbm %s0, %s171
          %s174 = sshll.u32 %s164, 4
          %s175 = int_to_ptr.vmem [resolvable:$true] %s174
          %177 = dma.hbm_to_vmem [thread:$0]  %s172, 128, %s175, %s161
        $region20: #{tpu_custom_call.1} parent=15 // pred_fallthru
          _
        // Predicated region
        $region21: #{tpu_custom_call.1} parent=15 // pred_check
          %p178 = pneg %p78
        $region22: #{tpu_custom_call.1} parent=15 // pred_check_branch
          %180 = sbr.rel (%p178) target = $region24
        $region23: #{tpu_custom_call.1} parent=15 // pred_region
          %s181 = sand.u32 %s18, 1
          %s182 = scalar_lea.sflag [#allocation6], %s181
          %s183 = sand.u32 %s68, 1
          %s184 = smul.addr %s183, 4
          %s185 = scalar_lea.vmem [#allocation5], %s184
          %s186 = smul.u32 4, %s25
          %s188 = ssub.s32 64, 64
          %189 = vsyncadd %s182, %s188
          %s190 = smul.addr %s186, 16
          %s191 = scalar_lea.hbm %s1, %s190
          %s193 = sshll.u32 %s185, 4
          %s194 = int_to_ptr.vmem [resolvable:$true] %s193
          %196 = dma.hbm_to_vmem [thread:$0]  %s191, 64, %s194, %s182
        $region24: #{tpu_custom_call.1} parent=15 // pred_fallthru
          _
        // Predicated region
        $region25: #{tpu_custom_call.1} parent=15 // pred_check
          %p197 = pneg %p104
        $region26: #{tpu_custom_call.1} parent=15 // pred_check_branch
          %199 = sbr.rel (%p197) target = $region28
        $region27: #{tpu_custom_call.1} parent=15 // pred_region
          %s200 = sand.u32 %s18, 1
          %s201 = scalar_lea.sflag [#allocation6], %s200
          %s202 = sand.u32 %s94, 1
          %s203 = smul.addr %s202, 4
          %s204 = scalar_lea.vmem [#allocation7], %s203
          %s205 = smul.u32 4, %s25
          %s207 = ssub.s32 64, 64
          %208 = vsyncadd %s201, %s207
          %s209 = smul.addr %s205, 16
          %s210 = scalar_lea.hbm %s2, %s209
          %s212 = sshll.u32 %s204, 4
          %s213 = int_to_ptr.vmem [resolvable:$true] %s212
          %215 = dma.hbm_to_vmem [thread:$0]  %s210, 64, %s213, %s201
        $region28: #{tpu_custom_call.1} parent=15 // pred_fallthru
          _
      $region16: #{tpu_custom_call.1} parent=5 // pred_fallthru
        _
      %p216 = scmp.le.s32.totalorder 1, %s18
      %p217 = scmp.lt.s32.totalorder %s18, 3
      %p218 = pnand %p216, %p217
      %p219 = pneg %p218
      // Predicated region
      $region29: #{tpu_custom_call.1} parent=5 // pred_check
        _
      $region30: #{tpu_custom_call.1} parent=5 // pred_check_branch
        %221 = sbr.rel (%p218) target = $region32
      $region31: #{tpu_custom_call.1} parent=5 // pred_region
        %s222 = ssub.s32 %s18, 1
        %s223 = sand.u32 %s45, 1
        %s224 = scalar_lea.sflag [#allocation3], %s223
        %s225 = sand.u32 %s45, 1
        %s226 = smul.addr %s225, 8
        %s227 = scalar_lea.vmem [#allocation2], %s226
        // Predicated region
        $region33: #{tpu_custom_call.1} parent=31 // pred_check
          %p228 = pneg %p58
        $region34: #{tpu_custom_call.1} parent=31 // pred_check_branch
          %230 = sbr.rel (%p228) target = $region36
        $region35: #{tpu_custom_call.1} parent=31 // pred_region
          %231 = dma.done %s224, 128
        $region36: #{tpu_custom_call.1} parent=31 // pred_fallthru
          _
        %s232 = sand.u32 %s23, 1
        %s233 = scalar_lea.sflag [#allocation6], %s232
        %s234 = sand.u32 %s71, 1
        %s235 = smul.addr %s234, 4
        %s236 = scalar_lea.vmem [#allocation5], %s235
        // Predicated region
        $region37: #{tpu_custom_call.1} parent=31 // pred_check
          %p237 = pneg %p84
        $region38: #{tpu_custom_call.1} parent=31 // pred_check_branch
          %239 = sbr.rel (%p237) target = $region40
        $region39: #{tpu_custom_call.1} parent=31 // pred_region
          %240 = dma.done %s233, 64
        $region40: #{tpu_custom_call.1} parent=31 // pred_fallthru
          _
        %s241 = sand.u32 %s23, 1
        %s242 = scalar_lea.sflag [#allocation6], %s241
        %s243 = sand.u32 %s97, 1
        %s244 = smul.addr %s243, 4
        %s245 = scalar_lea.vmem [#allocation7], %s244
        // Predicated region
        $region41: #{tpu_custom_call.1} parent=31 // pred_check
          %p246 = pneg %p110
        $region42: #{tpu_custom_call.1} parent=31 // pred_check_branch
          %248 = sbr.rel (%p246) target = $region44
        $region43: #{tpu_custom_call.1} parent=31 // pred_region
          %249 = dma.done %s242, 64
        $region44: #{tpu_custom_call.1} parent=31 // pred_fallthru
          _
        %s250 = sand.u32 %s45, 1
        %s251 = scalar_lea.sflag [#allocation3], %s250
        %s252 = sand.u32 %s45, 1
        %s253 = smul.addr %s252, 8
        %s254 = scalar_lea.vmem [#allocation2], %s253
        %p255 = pneg %p58
        %p256 = pneg %p55
        %s257 = sand.u32 %s23, 1
        %s258 = scalar_lea.sflag [#allocation6], %s257
        %s259 = sand.u32 %s71, 1
        %s260 = smul.addr %s259, 4
        %s261 = scalar_lea.vmem [#allocation5], %s260
        %p262 = pneg %p84
        %p263 = pneg %p81
        %s264 = sand.u32 %s23, 1
        %s265 = scalar_lea.sflag [#allocation6], %s264
        %s266 = sand.u32 %s97, 1
        %s267 = smul.addr %s266, 4
        %s268 = scalar_lea.vmem [#allocation7], %s267
        %p269 = pneg %p110
        %p270 = pneg %p107
        %p271 = pneg %p138
        %p272 = pneg %p135
        %s273 = sand.u32 %s125, 1
        %s274 = scalar_lea.sflag [#allocation4], %s273
        %s275 = sand.u32 %s125, 1
        %s276 = smul.addr %s275, 8
        %s277 = scalar_lea.vmem [#allocation8], %s276
        %s278 = smul.u32 4, %s27
        %s279 = smul.u32 4, %s27
        %s280 = smul.u32 4, %s27
        %s281 = smul.u32 4, %s27
        %v282 = vld [vmem:[%s227] sm:$0xff]
        %v283 = vld [vmem:[%s236] sm:$0xf]
        %v285 = vlaneseq
        %v286 = vshrl.u32 %v285, 7
        %v287 = vsub.s32 0, %v286
        %v288 = vrot.slane %v283, %v287
        %v289 = vlaneseq
        %v290 = vshrl.u32 %v289, 7
        %v291 = vsub.s32 1, %v290
        %v292 = vrot.slane %v283, %v291
        %v293 = vlaneseq
        %v294 = vshrl.u32 %v293, 7
        %v295 = vsub.s32 2, %v294
        %v296 = vrot.slane %v283, %v295
        %v297 = vlaneseq
        %v298 = vshrl.u32 %v297, 7
        %v299 = vsub.s32 3, %v298
        %v300 = vrot.slane %v283, %v299
        %v301 = vcombine.low %v288, %v292
        %v302 = vcombine.low %v296, %v300
        %v304 = vunpack.c.l.s4 1983009808
        %v305 = vunpack.c.0.s8 %v304
        %v306 = vlaneseq
        %v307 = vshrl.u32 %v306, 7
        %v308 = vsub.s32 %v305, %v307
        %v309 = vrot.slane %v301, %v308
        %v311 = vunpack.c.l.s4 1983009808
        %v312 = vunpack.c.0.s8 %v311
        %v313 = vlaneseq
        %v314 = vshrl.u32 %v313, 7
        %v315 = vsub.s32 %v312, %v314
        %v316 = vrot.slane %v302, %v315
        %v317 = vcombine.low %v309, %v316
        %v319 = vsub.f32 %v282, %v317
        %v320 = vld [vmem:[%s245] sm:$0xf]
        %v322 = vlaneseq
        %v323 = vshrl.u32 %v322, 7
        %v324 = vsub.s32 0, %v323
        %v325 = vrot.slane %v320, %v324
        %v326 = vlaneseq
        %v327 = vshrl.u32 %v326, 7
        %v328 = vsub.s32 1, %v327
        %v329 = vrot.slane %v320, %v328
        %v330 = vlaneseq
        %v331 = vshrl.u32 %v330, 7
        %v332 = vsub.s32 2, %v331
        %v333 = vrot.slane %v320, %v332
        %v334 = vlaneseq
        %v335 = vshrl.u32 %v334, 7
        %v336 = vsub.s32 3, %v335
        %v337 = vrot.slane %v320, %v336
        %v338 = vcombine.low %v325, %v329
        %v339 = vcombine.low %v333, %v337
        %v341 = vunpack.c.l.s4 1983009808
        %v342 = vunpack.c.0.s8 %v341
        %v343 = vlaneseq
        %v344 = vshrl.u32 %v343, 7
        %v345 = vsub.s32 %v342, %v344
        %v346 = vrot.slane %v338, %v345
        %v348 = vunpack.c.l.s4 1983009808
        %v349 = vunpack.c.0.s8 %v348
        %v350 = vlaneseq
        %v351 = vshrl.u32 %v350, 7
        %v352 = vsub.s32 %v349, %v351
        %v353 = vrot.slane %v339, %v352
        %v354 = vcombine.low %v346, %v353
        %v356 = vmul.f32 %v319, %v354
        %v357 = vmax.f32 %v356, -5.0
        %v358 = vmin.f32 %v357, 5.0
        %359 = vst [vmem:[%s277] sm:$0xff] %v358
        %s360 = sand.u32 %s125, 1
        %s361 = scalar_lea.sflag [#allocation4], %s360
        %s362 = sand.u32 %s125, 1
        %s363 = smul.addr %s362, 8
        %s364 = scalar_lea.vmem [#allocation8], %s363
        // Predicated region
        $region45: #{tpu_custom_call.1} parent=31 // pred_check
          %p365 = pneg %p135
        $region46: #{tpu_custom_call.1} parent=31 // pred_check_branch
          %367 = sbr.rel (%p365) target = $region48
        $region47: #{tpu_custom_call.1} parent=31 // pred_region
          %s368 = smul.u32 4, %s27
          %s370 = ssub.s32 128, 128
          %371 = vsyncadd %s361, %s370
          %s372 = smul.addr %s28, 8
          %s373 = sadd.s32 %s368, %s372
          %s374 = smul.addr %s373, 32
          %s375 = scalar_lea.hbm %s3, %s374
          %s377 = sshll.u32 %s364, 4
          %s378 = int_to_ptr.vmem [resolvable:$true] %s377
          %380 = dma.vmem_to_hbm [thread:$0]  %s378, 128, %s375, %s361
        $region48: #{tpu_custom_call.1} parent=31 // pred_fallthru
          _
      $region32: #{tpu_custom_call.1} parent=5 // pred_fallthru
        _
      %p381 = scmp.le.s32.totalorder 2, %s18
      // Predicated region
      $region49: #{tpu_custom_call.1} parent=5 // pred_check
        %p382 = pneg %p381
      $region50: #{tpu_custom_call.1} parent=5 // pred_check_branch
        %384 = sbr.rel (%p382) target = $region52
      $region51: #{tpu_custom_call.1} parent=5 // pred_region
        %s385 = ssub.s32 %s18, 2
        // Predicated region
        $region53: #{tpu_custom_call.1} parent=51 // pred_check
          %p386 = pneg %p141
        $region54: #{tpu_custom_call.1} parent=51 // pred_check_branch
          %388 = sbr.rel (%p386) target = $region56
        $region55: #{tpu_custom_call.1} parent=51 // pred_region
          %s389 = sand.u32 %s126, 1
          %s390 = scalar_lea.sflag [#allocation4], %s389
          %s391 = sand.u32 %s126, 1
          %s392 = smul.addr %s391, 8
          %s393 = scalar_lea.vmem [#allocation8], %s392
          %394 = dma.done %s390, 128
        $region56: #{tpu_custom_call.1} parent=51 // pred_fallthru
          _
      $region52: #{tpu_custom_call.1} parent=5 // pred_fallthru
        _
    $region6: #{tpu_custom_call.1} parent=1 // loop_footer
      %s22 = sadd.s32 1, %s18
    $region7: #{tpu_custom_call.1} parent=1 // loop_footer_branch
      %17 = sbr.rel target = $region3
    $region8: #{tpu_custom_call.1} parent=1 // loop_exit
      _
    %395 = vsyncpa [#allocation3], 1
    %s396 = scalar_lea.sflag [#allocation3], 1
    %397 = vsyncpa %s396, 1
    %398 = vsyncpa [#allocation6], 1
    %s399 = scalar_lea.sflag [#allocation6], 1
    %400 = vsyncpa %s399, 1
    %401 = vsyncpa [#allocation4], 1
    %s402 = scalar_lea.sflag [#allocation4], 1
    %403 = vsyncpa %s402, 1

</llo_original>
